<compile_context>
chip_gen: v7x
topology: tpu7x:2x2x1
jax: 0.10.0
libtpu: 0.0.40
codegen_flags: <defaults>
</compile_context>

<pallas_src>
import jax
import jax.numpy as jnp
from jax.experimental import pallas as pl
from jax.experimental.pallas import tpu as pltpu

_MIB = 1024 * 1024


def _ceil_to(x, m):
    return ((x + m - 1) // m) * m


# ----------------------------------------------------------------------------- kernels
def _attn_classify_kernel_flat(sim_ref, yflat_ref, out_ref):
    """sim_ref: (TB, S); yflat_ref: (TB, S*C) lane-dense; out_ref: (TB, C)."""
    tb, s_len = sim_ref.shape
    n_cls = out_ref.shape[1]

    s = sim_ref[...].astype(jnp.float32)                       # (TB, S)
    m = jnp.max(s, axis=-1, keepdims=True)
    e = jnp.exp(s - m)
    p = e / jnp.sum(e, axis=-1, keepdims=True)                 # exact softmax, (TB, S) f32

    # Chunk-free S-contraction on the VPU: one (TB, C) lane slice of the flat
    # tile per support row, accumulated in f32. No (TB, S, C) f32 intermediate.
    acc = jnp.zeros((tb, n_cls), jnp.float32)
    for si in range(s_len):                                    # S is small (few-shot)
        ys = yflat_ref[:, si * n_cls:(si + 1) * n_cls].astype(jnp.float32)  # (TB, C)
        acc = acc + p[:, si:si + 1] * ys
    out_ref[...] = acc.astype(out_ref.dtype)


def _attn_classify_kernel_3d(sim_ref, y_ref, out_ref):
    """Fallback for large S (outside the few-shot regime): (TB, S, C) tile."""
    s = sim_ref[...].astype(jnp.float32)
    m = jnp.max(s, axis=-1, keepdims=True)
    e = jnp.exp(s - m)
    p = e / jnp.sum(e, axis=-1, keepdims=True)
    y = y_ref[...].astype(jnp.float32)
    out_ref[...] = jnp.sum(p[:, :, None] * y, axis=1).astype(out_ref.dtype)


# ----------------------------------------------------------------------------- wrapper
def _attentional_classify_pallas(similarities, support_set_y, block_b=None):
    B, S = similarities.shape
    Bc, Sc, C = support_set_y.shape
    assert (B, S) == (Bc, Sc), (similarities.shape, support_set_y.shape)
    out_dtype = jnp.result_type(similarities.dtype, support_set_y.dtype)

    y_itemsize = jnp.dtype(support_set_y.dtype).itemsize
    sim_itemsize = jnp.dtype(similarities.dtype).itemsize
    out_itemsize = jnp.dtype(out_dtype).itemsize

    # Flat lane-dense path for realistic few-shot S; 3-D tile fallback otherwise.
    use_flat = S <= 64

    # --- per-batch-row VMEM bytes: lane/sublane padding + double buffers + f32 temps.
    lanes = lambda n: _ceil_to(max(int(n), 1), 128)
    if use_flat:
        y_row = lanes(S * C) * y_itemsize
        tmp_row = 4 * lanes(S) * 4 + 4 * lanes(C) * 4          # sim/e/p + acc/slice f32
    else:
        sub_q = max(8, 32 // y_itemsize)                       # sublane packing quantum
        y_row = _ceil_to(S, sub_q) * lanes(C) * y_itemsize
        tmp_row = (4 * lanes(S) * 4                             # sim/e/p f32
                   + 2 * _ceil_to(S, 8) * lanes(C) * 4          # full f32 product (fallback only)
                   + 2 * lanes(C) * 4)
    row_bytes = (2 * y_row                                     # y tile, double-buffered
                 + 2 * lanes(S) * sim_itemsize                 # sim tile, double-buffered
                 + 2 * lanes(C) * out_itemsize                 # out tile, double-buffered
                 + tmp_row)

    # --- generation-aware VMEM budget.
    try:
        vmem_cap = int(pltpu.get_tpu_info().vmem_capacity_bytes)
    except Exception:
        vmem_cap = 64 * _MIB                                   # conservative (v7x per-TC)
    vmem_cap = max(vmem_cap, 32 * _MIB)
    tile_budget = max(min(int(vmem_cap * 0.625), vmem_cap - 16 * _MIB), 8 * _MIB)

    if block_b is None:
        block_b = tile_budget // row_bytes
        block_b -= block_b % 8
        block_b = int(max(8, min(block_b, 1024)))
        # Keep >=2 (ideally 4) grid steps when B allows: megacore + pipeline overlap.
        target_steps = min(4, pl.cdiv(B, 8))
        if target_steps >= 2:
            block_b = min(block_b, _ceil_to(pl.cdiv(B, target_steps), 8))
    block_b = min(int(block_b), _ceil_to(B, 8))
    block_b = max(8, block_b - block_b % 8)

    num_blocks = pl.cdiv(B, block_b)
    Bp = num_blocks * block_b

    needed = block_b * row_bytes
    if 8 * row_bytes > vmem_cap - 4 * _MIB:
        # TODO(synk): for huge S*C even an 8-row tile overflows VMEM; would need a
        # second ('arbitrary') grid axis over S with a (TB, C) accumulator.
        pass
    vmem_limit = int(min(vmem_cap - 2 * _MIB,
                         max(tile_budget + 16 * _MIB, needed + 8 * _MIB)))
    vmem_limit = max(vmem_limit, 16 * _MIB)

    # Pad ONLY the tiny similarities (finite softmax on discarded tail rows).
    # support_set_y is never copied: the partial tail block reads past its end,
    # but those rows land in out rows >= B which are sliced off below.
    if Bp != B:
        similarities = jnp.pad(similarities, ((0, Bp - B), (0, 0)))

    cost = pl.CostEstimate(
        flops=2 * B * S * C,
        transcendentals=B * S,
        bytes_accessed=B * S * C * y_itemsize + B * S * sim_itemsize + B * C * out_itemsize,
    )

    if use_flat:
        y_in = support_set_y.reshape(B, S * C)                 # free row-major merge
        kernel = _attn_classify_kernel_flat
        y_spec = pl.BlockSpec((block_b, S * C), lambda i: (i, 0))
    else:
        y_in = support_set_y
        kernel = _attn_classify_kernel_3d
        y_spec = pl.BlockSpec((block_b, S, C), lambda i: (i, 0, 0))

    out = pl.pallas_call(
        kernel,
        out_shape=jax.ShapeDtypeStruct((Bp, C), out_dtype),
        grid_spec=pltpu.PrefetchScalarGridSpec(
            num_scalar_prefetch=0,
            grid=(num_blocks,),
            in_specs=[pl.BlockSpec((block_b, S), lambda i: (i, 0)), y_spec],
            out_specs=pl.BlockSpec((block_b, C), lambda i: (i, 0)),
        ),
        compiler_params=pltpu.CompilerParams(
            dimension_semantics=("parallel",),                 # shard batch grid across TCs
            vmem_limit_bytes=vmem_limit,
        ),
        cost_estimate=cost,
    )(similarities, y_in)

    return out[:B]


def attentional_classify(similarities, support_set_y, *, use_pallas=None):
    """similarities: [B, S]; support_set_y: [B, S, C] -> softmax pdf (torch-style squeeze)."""
    B, S = similarities.shape
    C = support_set_y.shape[-1]

    if use_pallas is None:
        # Few-shot sized inputs are pure launch/DMA overhead for a custom kernel;
        # only take the Pallas path when streaming y from HBM actually dominates.
        use_pallas = (B * S * C) >= (1 << 20)

    if use_pallas:
        preds = _attentional_classify_pallas(similarities, support_set_y)
    else:
        p = jax.nn.softmax(similarities.astype(jnp.float32), axis=1)
        preds = jnp.einsum("bs,bsc->bc", p, support_set_y.astype(jnp.float32))
        preds = preds.astype(jnp.result_type(similarities.dtype, support_set_y.dtype))

    # torch .squeeze(): drop ALL size-1 dims (matches reference for B==1 / C==1 too)
    return jnp.squeeze(preds)


def _reference(similarities, support_set_y):
    p = jax.nn.softmax(similarities.astype(jnp.float32), axis=1)
    out = jnp.einsum("bs,bsc->bc", p, support_set_y.astype(jnp.float32))
    return jnp.squeeze(out.astype(jnp.result_type(similarities.dtype, support_set_y.dtype)))


if __name__ == "__main__":
    key = jax.random.PRNGKey(0)

    # Case 1: the module's nominal few-shot shapes (force the Pallas path).
    B, S, C = 2, 8, 32
    k1, k2, k3, k4 = jax.random.split(key, 4)
    similarities = jax.random.normal(k1, (B, S), dtype=jnp.float32)
    labels = jax.random.randint(k2, (B, S), 0, C)
    support_set_y = jax.nn.one_hot(labels, C, dtype=jnp.float32)

    preds = attentional_classify(similarities, support_set_y, use_pallas=True)
    preds = jax.block_until_ready(preds)
    ref = _reference(similarities, support_set_y)
    assert preds.shape == (B, C), preds.shape
    assert jnp.allclose(preds, ref, atol=1e-5, rtol=1e-5), (
        f"max err {jnp.max(jnp.abs(preds - ref))}"
    )

    # Case 2: batch not a multiple of the tile -> exercises the partial tail block
    # (no y padding, only the tiny similarities are padded).
    B2, S2, C2 = 10, 16, 64
    sim2 = jax.random.normal(k3, (B2, S2), dtype=jnp.float32)
    y2 = jax.nn.one_hot(jax.random.randint(k4, (B2, S2), 0, C2), C2, dtype=jnp.float32)
    preds2 = jax.block_until_ready(attentional_classify(sim2, y2, use_pallas=True))
    ref2 = _reference(sim2, y2)
    assert preds2.shape == (B2, C2), preds2.shape
    assert jnp.allclose(preds2, ref2, atol=1e-5, rtol=1e-5), (
        f"max err {jnp.max(jnp.abs(preds2 - ref2))}"
    )

    print("KERNEL_OK")
</pallas_src>

<mosaic_0001>
module attributes {stable_mosaic.version = 11 : i64} {
  func.func @_attn_classify_kernel_flat(%arg0: i32, %arg1: memref<8x8xf32, #tpu.memory_space<vmem>>, %arg2: memref<8x256xf32, #tpu.memory_space<vmem>>, %arg3: memref<8x32xf32, #tpu.memory_space<vmem>>) attributes {dimension_semantics = [#tpu.dimension_semantics<parallel>], iteration_bounds = array<i64: 1>, scalar_prefetch = 0 : i64, scratch_operands = 0 : i64, tpu.core_type = #tpu.core_type<tc>, window_params = [{transform_indices = @transform_0, window_bounds = array<i64: 8, 8>}, {transform_indices = @transform_1, window_bounds = array<i64: 8, 256>}, {transform_indices = @transform_2, window_bounds = array<i64: 8, 32>}]} {
    %c0 = arith.constant 0 : index
    %c0_0 = arith.constant 0 : index
    %0 = vector.load %arg1[%c0, %c0_0] : memref<8x8xf32, #tpu.memory_space<vmem>>, vector<8x8xf32>
    %cst = arith.constant dense<0xFF800000> : vector<8xf32>
    %1 = vector.multi_reduction <maximumf>, %0, %cst [1] : vector<8x8xf32> to vector<8xf32>
    %2 = vector.shape_cast %1 : vector<8xf32> to vector<8x1xf32>
    %3 = vector.broadcast %2 : vector<8x1xf32> to vector<8x8xf32>
    %4 = arith.subf %0, %3 : vector<8x8xf32>
    %5 = math.exp %4 : vector<8x8xf32>
    %cst_1 = arith.constant dense<0.000000e+00> : vector<8xf32>
    %6 = vector.multi_reduction <add>, %5, %cst_1 [1] : vector<8x8xf32> to vector<8xf32>
    %7 = vector.shape_cast %6 : vector<8xf32> to vector<8x1xf32>
    %8 = vector.broadcast %7 : vector<8x1xf32> to vector<8x8xf32>
    %9 = arith.divf %5, %8 : vector<8x8xf32>
    %cst_2 = arith.constant 0.000000e+00 : f32
    %10 = vector.broadcast %cst_2 : f32 to vector<8x32xf32>
    %c0_3 = arith.constant 0 : index
    %c0_4 = arith.constant 0 : index
    %11 = vector.load %arg2[%c0_3, %c0_4] : memref<8x256xf32, #tpu.memory_space<vmem>>, vector<8x32xf32>
    %12 = vector.extract_strided_slice %9 {offsets = [0, 0], sizes = [8, 1], strides = [1, 1]} : vector<8x8xf32> to vector<8x1xf32>
    %13 = vector.broadcast %12 : vector<8x1xf32> to vector<8x32xf32>
    %14 = arith.mulf %13, %11 : vector<8x32xf32>
    %15 = arith.addf %10, %14 : vector<8x32xf32>
    %c0_5 = arith.constant 0 : index
    %c32 = arith.constant 32 : index
    %16 = vector.load %arg2[%c0_5, %c32] : memref<8x256xf32, #tpu.memory_space<vmem>>, vector<8x32xf32>
    %17 = vector.extract_strided_slice %9 {offsets = [0, 1], sizes = [8, 1], strides = [1, 1]} : vector<8x8xf32> to vector<8x1xf32>
    %18 = vector.broadcast %17 : vector<8x1xf32> to vector<8x32xf32>
    %19 = arith.mulf %18, %16 : vector<8x32xf32>
    %20 = arith.addf %15, %19 : vector<8x32xf32>
    %c0_6 = arith.constant 0 : index
    %c64 = arith.constant 64 : index
    %21 = vector.load %arg2[%c0_6, %c64] : memref<8x256xf32, #tpu.memory_space<vmem>>, vector<8x32xf32>
    %22 = vector.extract_strided_slice %9 {offsets = [0, 2], sizes = [8, 1], strides = [1, 1]} : vector<8x8xf32> to vector<8x1xf32>
    %23 = vector.broadcast %22 : vector<8x1xf32> to vector<8x32xf32>
    %24 = arith.mulf %23, %21 : vector<8x32xf32>
    %25 = arith.addf %20, %24 : vector<8x32xf32>
    %c0_7 = arith.constant 0 : index
    %c96 = arith.constant 96 : index
    %26 = vector.load %arg2[%c0_7, %c96] : memref<8x256xf32, #tpu.memory_space<vmem>>, vector<8x32xf32>
    %27 = vector.extract_strided_slice %9 {offsets = [0, 3], sizes = [8, 1], strides = [1, 1]} : vector<8x8xf32> to vector<8x1xf32>
    %28 = vector.broadcast %27 : vector<8x1xf32> to vector<8x32xf32>
    %29 = arith.mulf %28, %26 : vector<8x32xf32>
    %30 = arith.addf %25, %29 : vector<8x32xf32>
    %c0_8 = arith.constant 0 : index
    %c128 = arith.constant 128 : index
    %31 = vector.load %arg2[%c0_8, %c128] : memref<8x256xf32, #tpu.memory_space<vmem>>, vector<8x32xf32>
    %32 = vector.extract_strided_slice %9 {offsets = [0, 4], sizes = [8, 1], strides = [1, 1]} : vector<8x8xf32> to vector<8x1xf32>
    %33 = vector.broadcast %32 : vector<8x1xf32> to vector<8x32xf32>
    %34 = arith.mulf %33, %31 : vector<8x32xf32>
    %35 = arith.addf %30, %34 : vector<8x32xf32>
    %c0_9 = arith.constant 0 : index
    %c160 = arith.constant 160 : index
    %36 = vector.load %arg2[%c0_9, %c160] : memref<8x256xf32, #tpu.memory_space<vmem>>, vector<8x32xf32>
    %37 = vector.extract_strided_slice %9 {offsets = [0, 5], sizes = [8, 1], strides = [1, 1]} : vector<8x8xf32> to vector<8x1xf32>
    %38 = vector.broadcast %37 : vector<8x1xf32> to vector<8x32xf32>
    %39 = arith.mulf %38, %36 : vector<8x32xf32>
    %40 = arith.addf %35, %39 : vector<8x32xf32>
    %c0_10 = arith.constant 0 : index
    %c192 = arith.constant 192 : index
    %41 = vector.load %arg2[%c0_10, %c192] : memref<8x256xf32, #tpu.memory_space<vmem>>, vector<8x32xf32>
    %42 = vector.extract_strided_slice %9 {offsets = [0, 6], sizes = [8, 1], strides = [1, 1]} : vector<8x8xf32> to vector<8x1xf32>
    %43 = vector.broadcast %42 : vector<8x1xf32> to vector<8x32xf32>
    %44 = arith.mulf %43, %41 : vector<8x32xf32>
    %45 = arith.addf %40, %44 : vector<8x32xf32>
    %c0_11 = arith.constant 0 : index
    %c224 = arith.constant 224 : index
    %46 = vector.load %arg2[%c0_11, %c224] : memref<8x256xf32, #tpu.memory_space<vmem>>, vector<8x32xf32>
    %47 = vector.extract_strided_slice %9 {offsets = [0, 7], sizes = [8, 1], strides = [1, 1]} : vector<8x8xf32> to vector<8x1xf32>
    %48 = vector.broadcast %47 : vector<8x1xf32> to vector<8x32xf32>
    %49 = arith.mulf %48, %46 : vector<8x32xf32>
    %50 = arith.addf %45, %49 : vector<8x32xf32>
    %c0_12 = arith.constant 0 : index
    %c0_13 = arith.constant 0 : index
    %51 = vector.load %arg3[%c0_12, %c0_13] : memref<8x32xf32, #tpu.memory_space<vmem>>, vector<8x32xf32>
    tpu.vector_store %arg3[%c0_12, %c0_13], %50 {strides = array<i32>} : memref<8x32xf32, #tpu.memory_space<vmem>>, vector<8x32xf32>,
    return
  }
  func.func @transform_0(%arg0: i32) -> (i32, i32) {
    %c0_i32 = arith.constant 0 : i32
    %c0_i32_0 = arith.constant 0 : i32
    return %arg0, %c0_i32 : i32, i32
  }
  func.func @transform_1(%arg0: i32) -> (i32, i32) {
    %c0_i32 = arith.constant 0 : i32
    %c0_i32_0 = arith.constant 0 : i32
    return %arg0, %c0_i32 : i32, i32
  }
  func.func @transform_2(%arg0: i32) -> (i32, i32) {
    %c0_i32 = arith.constant 0 : i32
    %c0_i32_0 = arith.constant 0 : i32
    return %arg0, %c0_i32 : i32, i32
  }
}

</mosaic_0001>

<llo_original>
// kernel: tpu_custom_call.1
$region0: #{tpu_custom_call.1}
  #allocation0 [shape = 'u32[]', space=smem, size = 0x4, offset = 0x4, fixed_abs, tag = 'smem constant byte address 0x4 - core index']
  #allocation1 [shape = 'u32[144,128]{1,0:T(1,128)}', space=vmem, size = 0x12000, scoped, tag = 'internal scratch']
  %s0 = inlined_call_operand.hbm [shape: f32[8,8], index: 0, kind: input, shape index: {}]
  %s1 = inlined_call_operand.hbm [shape: f32[2,256], index: 1, kind: input, shape index: {}]
  %s2 = inlined_call_operand.hbm [shape: f32[8,32], index: 2, kind: output, shape index: {}]
  %s3 = sld [smem:[#allocation0]]
  $region26: #{tpu_custom_call.1} parent=0
    _
  %s5 = ssub.s32 1, %s3
  %s6 = scalar_select 0, %s5, %s3
  $region1: #{tpu_custom_call.1} parent=0
    #allocation2 [shape = 'u8[4096]{0}', space=vmem, size = 0x1000, scoped, tag = 'input window, operand 0, single buffered']
    #allocation3 [shape = 's32[1]{0}', space=sflag, size = 0x4, scoped, tag = 'scoped memory for tpu_custom_call.1']
    #allocation4 [shape = 's32[1]{0}', space=sflag, size = 0x4, scoped, tag = 'scoped memory for tpu_custom_call.1']
    #allocation5 [shape = 'u8[8192]{0}', space=vmem, size = 0x2000, scoped, tag = 'input window, operand 1, single buffered']
    #allocation6 [shape = 's32[1]{0}', space=sflag, size = 0x4, scoped, tag = 'scoped memory for tpu_custom_call.1']
    #allocation7 [shape = 'u8[4096]{0}', space=vmem, size = 0x1000, scoped, tag = 'output window, operand 0, single buffered']
    %7 = vsyncpa [#allocation3], 0
    %8 = vsyncpa [#allocation6], 0
    %9 = vsyncpa [#allocation4], 0
    // Predicated region
    $region2: #{tpu_custom_call.1} parent=1 // pred_check
      _
    $region3: #{tpu_custom_call.1} parent=1 // pred_check_branch
      %11 = sbr.rel (0) target = $region5
    $region4: #{tpu_custom_call.1} parent=1 // pred_region
      %s13 = ssub.s32 128, 128
      %14 = vsyncadd [#allocation3], %s13
      %s16 = sshll.u32 [#allocation2], 4
      %s17 = int_to_ptr.vmem [resolvable:$true] %s16
      %19 = dma.hbm_to_vmem [thread:$0]  %s0, 128, %s17, [#allocation3]
    $region5: #{tpu_custom_call.1} parent=1 // pred_fallthru
      _
    // Predicated region
    $region6: #{tpu_custom_call.1} parent=1 // pred_check
      _
    $region7: #{tpu_custom_call.1} parent=1 // pred_check_branch
      %21 = sbr.rel (0) target = $region9
    $region8: #{tpu_custom_call.1} parent=1 // pred_region
      %s23 = ssub.s32 256, 64
      %24 = vsyncadd [#allocation6], %s23
      %s25 = sshll.u32 [#allocation5], 4
      %s26 = int_to_ptr.vmem [resolvable:$true] %s25
      %31 = dma.hbm_to_vmem [thread:$0]  %s1, 64, %s26, [#allocation6], 64, 64, 4
    $region9: #{tpu_custom_call.1} parent=1 // pred_fallthru
      _
    // Predicated region
    $region10: #{tpu_custom_call.1} parent=1 // pred_check
      _
    $region11: #{tpu_custom_call.1} parent=1 // pred_check_branch
      %33 = sbr.rel (0) target = $region13
    $region12: #{tpu_custom_call.1} parent=1 // pred_region
      %34 = dma.done [#allocation3], 128
    $region13: #{tpu_custom_call.1} parent=1 // pred_fallthru
      _
    // Predicated region
    $region14: #{tpu_custom_call.1} parent=1 // pred_check
      _
    $region15: #{tpu_custom_call.1} parent=1 // pred_check_branch
      %36 = sbr.rel (0) target = $region17
    $region16: #{tpu_custom_call.1} parent=1 // pred_region
      %37 = dma.done [#allocation6], 256
    $region17: #{tpu_custom_call.1} parent=1 // pred_fallthru
      _
    %v38 = vld [vmem:[#allocation2] sm:$0xff]
    %vm39 = vcmask 64512
    %v40 = vsel %vm39, %v38, -inf
    %41 = vmax.xlane.f32.xlu0 %v40
    %v42 = vpop.xlane.xlu0 %41
    %v43 = vsub.f32 %v38, %v42
    %v44 = vmul.f32 %v43, 1.442695
    %v45 = vpow.pop %v44
    %v46 = vsel %vm39, %v45, 0.0
    %47 = vadd.xlane.f32.xlu0 %v46
    %v48 = vpop.xlane.xlu0 %47
    %v49 = vrcp.pop %v48
    %v50 = vmul.f32 %v45, %v49
    %v51 = vld [vmem:[#allocation5] sm:$0x3]
    %v52 = vld [vmem:[#allocation5 + $0x4] sm:$0x3]
    %v53 = vld [vmem:[#allocation5 + $0x8] sm:$0x3]
    %v54 = vld [vmem:[#allocation5 + $0xc] sm:$0x3]
    %56 = vset.pattern.permute.xlu0 0
    %57 = vperm.xlu0 %56, %v50
    %v58 = vpop.permute.xlu0 %57
    %v64 = vcombine.low %v51, %v52
    %v65 = vcombine.low %v53, %v54
    %v67 = vunpack.c.l.s4 1983009808
    %v68 = vunpack.c.0.s8 %v67
    %v69 = vlaneseq
    %v70 = vshrl.u32 %v69, 7
    %v71 = vsub.s32 %v68, %v70
    %v72 = vrot.slane %v64, %v71
    %v74 = vunpack.c.l.s4 1983009808
    %v75 = vunpack.c.0.s8 %v74
    %v76 = vlaneseq
    %v77 = vshrl.u32 %v76, 7
    %v78 = vsub.s32 %v75, %v77
    %v79 = vrot.slane %v65, %v78
    %v80 = vcombine.low %v72, %v79
    %v82 = vmul.f32 %v58, %v80
    %v83 = vadd.f32 %v82, 0.0
    %v84 = vld [vmem:[#allocation5] sm:$0x3]
    %v85 = vld [vmem:[#allocation5 + $0x4] sm:$0x3]
    %v86 = vld [vmem:[#allocation5 + $0x8] sm:$0x3]
    %v87 = vld [vmem:[#allocation5 + $0xc] sm:$0x3]
    %88 = vset.pattern.permute.xlu0 1
    %89 = vperm.xlu0 %88, %v50
    %v90 = vpop.permute.xlu0 %89
    %v96 = vcombine.low %v84, %v85
    %v97 = vcombine.low %v86, %v87
    %v99 = vunpack.c.l.s4 1983009808
    %v100 = vunpack.c.0.s8 %v99
    %v101 = vlaneseq
    %v102 = vshrl.u32 %v101, 7
    %v103 = vsub.s32 %v100, %v102
    %v104 = vrot.slane %v96, %v103
    %v106 = vunpack.c.l.s4 1983009808
    %v107 = vunpack.c.0.s8 %v106
    %v108 = vlaneseq
    %v109 = vshrl.u32 %v108, 7
    %v110 = vsub.s32 %v107, %v109
    %v111 = vrot.slane %v97, %v110
    %v112 = vcombine.low %v104, %v111
    %113 = vrot.lane.b32.xlu0 %v112, 96
    %v114 = vpop.permute.xlu0 %113
    %v116 = vmul.f32 %v90, %v114
    %v117 = vadd.f32 %v83, %v116
    %v118 = vld [vmem:[#allocation5] sm:$0x3]
    %v119 = vld [vmem:[#allocation5 + $0x4] sm:$0x3]
    %v120 = vld [vmem:[#allocation5 + $0x8] sm:$0x3]
    %v121 = vld [vmem:[#allocation5 + $0xc] sm:$0x3]
    %122 = vset.pattern.permute.xlu0 2
    %123 = vperm.xlu0 %122, %v50
    %v124 = vpop.permute.xlu0 %123
    %v130 = vcombine.low %v118, %v119
    %v131 = vcombine.low %v120, %v121
    %v133 = vunpack.c.l.s4 1983009808
    %v134 = vunpack.c.0.s8 %v133
    %v135 = vlaneseq
    %v136 = vshrl.u32 %v135, 7
    %v137 = vsub.s32 %v134, %v136
    %v138 = vrot.slane %v130, %v137
    %v140 = vunpack.c.l.s4 1983009808
    %v141 = vunpack.c.0.s8 %v140
    %v142 = vlaneseq
    %v143 = vshrl.u32 %v142, 7
    %v144 = vsub.s32 %v141, %v143
    %v145 = vrot.slane %v131, %v144
    %v146 = vcombine.low %v138, %v145
    %147 = vrot.lane.b32.xlu0 %v146, 64
    %v148 = vpop.permute.xlu0 %147
    %v150 = vmul.f32 %v124, %v148
    %v151 = vadd.f32 %v117, %v150
    %v152 = vld [vmem:[#allocation5] sm:$0x3]
    %v153 = vld [vmem:[#allocation5 + $0x4] sm:$0x3]
    %v154 = vld [vmem:[#allocation5 + $0x8] sm:$0x3]
    %v155 = vld [vmem:[#allocation5 + $0xc] sm:$0x3]
    %156 = vset.pattern.permute.xlu0 3
    %157 = vperm.xlu0 %156, %v50
    %v158 = vpop.permute.xlu0 %157
    %v164 = vcombine.low %v152, %v153
    %v165 = vcombine.low %v154, %v155
    %v167 = vunpack.c.l.s4 1983009808
    %v168 = vunpack.c.0.s8 %v167
    %v169 = vlaneseq
    %v170 = vshrl.u32 %v169, 7
    %v171 = vsub.s32 %v168, %v170
    %v172 = vrot.slane %v164, %v171
    %v174 = vunpack.c.l.s4 1983009808
    %v175 = vunpack.c.0.s8 %v174
    %v176 = vlaneseq
    %v177 = vshrl.u32 %v176, 7
    %v178 = vsub.s32 %v175, %v177
    %v179 = vrot.slane %v165, %v178
    %v180 = vcombine.low %v172, %v179
    %181 = vrot.lane.b32.xlu0 %v180, 32
    %v182 = vpop.permute.xlu0 %181
    %v184 = vmul.f32 %v158, %v182
    %v185 = vadd.f32 %v151, %v184
    %v186 = vld [vmem:[#allocation5 + $0x2] sm:$0x3]
    %v187 = vld [vmem:[#allocation5 + $0x6] sm:$0x3]
    %v188 = vld [vmem:[#allocation5 + $0xa] sm:$0x3]
    %v189 = vld [vmem:[#allocation5 + $0xe] sm:$0x3]
    %190 = vset.pattern.permute.xlu0 4
    %191 = vperm.xlu0 %190, %v50
    %v192 = vpop.permute.xlu0 %191
    %v198 = vcombine.low %v186, %v187
    %v199 = vcombine.low %v188, %v189
    %v201 = vunpack.c.l.s4 1983009808
    %v202 = vunpack.c.0.s8 %v201
    %v203 = vlaneseq
    %v204 = vshrl.u32 %v203, 7
    %v205 = vsub.s32 %v202, %v204
    %v206 = vrot.slane %v198, %v205
    %v208 = vunpack.c.l.s4 1983009808
    %v209 = vunpack.c.0.s8 %v208
    %v210 = vlaneseq
    %v211 = vshrl.u32 %v210, 7
    %v212 = vsub.s32 %v209, %v211
    %v213 = vrot.slane %v199, %v212
    %v214 = vcombine.low %v206, %v213
    %v216 = vmul.f32 %v192, %v214
    %v217 = vadd.f32 %v185, %v216
    %v218 = vld [vmem:[#allocation5 + $0x2] sm:$0x3]
    %v219 = vld [vmem:[#allocation5 + $0x6] sm:$0x3]
    %v220 = vld [vmem:[#allocation5 + $0xa] sm:$0x3]
    %v221 = vld [vmem:[#allocation5 + $0xe] sm:$0x3]
    %222 = vset.pattern.permute.xlu0 5
    %223 = vperm.xlu0 %222, %v50
    %v224 = vpop.permute.xlu0 %223
    %v230 = vcombine.low %v218, %v219
    %v231 = vcombine.low %v220, %v221
    %v233 = vunpack.c.l.s4 1983009808
    %v234 = vunpack.c.0.s8 %v233
    %v235 = vlaneseq
    %v236 = vshrl.u32 %v235, 7
    %v237 = vsub.s32 %v234, %v236
    %v238 = vrot.slane %v230, %v237
    %v240 = vunpack.c.l.s4 1983009808
    %v241 = vunpack.c.0.s8 %v240
    %v242 = vlaneseq
    %v243 = vshrl.u32 %v242, 7
    %v244 = vsub.s32 %v241, %v243
    %v245 = vrot.slane %v231, %v244
    %v246 = vcombine.low %v238, %v245
    %247 = vrot.lane.b32.xlu0 %v246, 96
    %v248 = vpop.permute.xlu0 %247
    %v250 = vmul.f32 %v224, %v248
    %v251 = vadd.f32 %v217, %v250
    %v252 = vld [vmem:[#allocation5 + $0x2] sm:$0x3]
    %v253 = vld [vmem:[#allocation5 + $0x6] sm:$0x3]
    %v254 = vld [vmem:[#allocation5 + $0xa] sm:$0x3]
    %v255 = vld [vmem:[#allocation5 + $0xe] sm:$0x3]
    %256 = vset.pattern.permute.xlu0 6
    %257 = vperm.xlu0 %256, %v50
    %v258 = vpop.permute.xlu0 %257
    %v264 = vcombine.low %v252, %v253
    %v265 = vcombine.low %v254, %v255
    %v267 = vunpack.c.l.s4 1983009808
    %v268 = vunpack.c.0.s8 %v267
    %v269 = vlaneseq
    %v270 = vshrl.u32 %v269, 7
    %v271 = vsub.s32 %v268, %v270
    %v272 = vrot.slane %v264, %v271
    %v274 = vunpack.c.l.s4 1983009808
    %v275 = vunpack.c.0.s8 %v274
    %v276 = vlaneseq
    %v277 = vshrl.u32 %v276, 7
    %v278 = vsub.s32 %v275, %v277
    %v279 = vrot.slane %v265, %v278
    %v280 = vcombine.low %v272, %v279
    %281 = vrot.lane.b32.xlu0 %v280, 64
    %v282 = vpop.permute.xlu0 %281
    %v284 = vmul.f32 %v258, %v282
    %v285 = vadd.f32 %v251, %v284
    %v286 = vld [vmem:[#allocation5 + $0x2] sm:$0x3]
    %v287 = vld [vmem:[#allocation5 + $0x6] sm:$0x3]
    %v288 = vld [vmem:[#allocation5 + $0xa] sm:$0x3]
    %v289 = vld [vmem:[#allocation5 + $0xe] sm:$0x3]
    %290 = vset.pattern.permute.xlu0 7
    %291 = vperm.xlu0 %290, %v50
    %v292 = vpop.permute.xlu0 %291
    %v298 = vcombine.low %v286, %v287
    %v299 = vcombine.low %v288, %v289
    %v301 = vunpack.c.l.s4 1983009808
    %v302 = vunpack.c.0.s8 %v301
    %v303 = vlaneseq
    %v304 = vshrl.u32 %v303, 7
    %v305 = vsub.s32 %v302, %v304
    %v306 = vrot.slane %v298, %v305
    %v308 = vunpack.c.l.s4 1983009808
    %v309 = vunpack.c.0.s8 %v308
    %v310 = vlaneseq
    %v311 = vshrl.u32 %v310, 7
    %v312 = vsub.s32 %v309, %v311
    %v313 = vrot.slane %v299, %v312
    %v314 = vcombine.low %v306, %v313
    %315 = vrot.lane.b32.xlu0 %v314, 32
    %v316 = vpop.permute.xlu0 %315
    %v318 = vmul.f32 %v292, %v316
    %v319 = vadd.f32 %v285, %v318
    %vm320 = vcmask 261120
    %321 = vst.msk [vmem:[#allocation7] sm:$0xff] %vm320, %v319
    // Predicated region
    $region18: #{tpu_custom_call.1} parent=1 // pred_check
      _
    $region19: #{tpu_custom_call.1} parent=1 // pred_check_branch
      %323 = sbr.rel (0) target = $region21
    $region20: #{tpu_custom_call.1} parent=1 // pred_region
      %s325 = ssub.s32 128, 128
      %326 = vsyncadd [#allocation4], %s325
      %s328 = sshll.u32 [#allocation7], 4
      %s329 = int_to_ptr.vmem [resolvable:$true] %s328
      %331 = dma.vmem_to_hbm [thread:$0]  %s329, 128, %s2, [#allocation4]
    $region21: #{tpu_custom_call.1} parent=1 // pred_fallthru
      _
    // Predicated region
    $region22: #{tpu_custom_call.1} parent=1 // pred_check
      _
    $region23: #{tpu_custom_call.1} parent=1 // pred_check_branch
      %333 = sbr.rel (0) target = $region25
    $region24: #{tpu_custom_call.1} parent=1 // pred_region
      %334 = dma.done [#allocation4], 128
    $region25: #{tpu_custom_call.1} parent=1 // pred_fallthru
      _
    %335 = vsyncpa [#allocation3], 1
    %336 = vsyncpa [#allocation6], 1
    %337 = vsyncpa [#allocation4], 1

</llo_original>
